<compile_context>
chip_gen: v6e
topology: v6e:2x2x1
jax: 0.10.0
libtpu: 0.0.40
codegen_flags: <defaults>
</compile_context>

<pallas_src>
import jax
import jax.numpy as jnp
from jax.experimental import pallas as pl
from jax.experimental.pallas import tpu as pltpu

LANE = 128
SUBLANE = 8
VMEM_BUDGET_BYTES = 24 * 1024 * 1024   # target for the double-buffered working set
VMEM_LIMIT_BYTES = 32 * 1024 * 1024    # raises v5e's 16 MiB default; == v6e/v7x default


def _round_up(x, m):
    return ((x + m - 1) // m) * m


def _make_clt_kernel(n_layers):
    """Kernel in the transposed (lane-dense) layout: batch on the lane axis.

    refs = (y_ref [1, TB], c_ref [c_dim, TB],
            w0 [d1, c_dim], b0 [d1, 1], ..., w_{L-1} [2, d_{L-1}], b_{L-1} [2, 1],
            out_ref [2, TB])
    """
    def kernel(*refs):
        y_ref, c_ref = refs[0], refs[1]
        out_ref = refs[-1]

        # ----- MLP hot path: intermediates are [H, TB] (all 128 lanes used) -----
        h = c_ref[...]
        for layer in range(n_layers):
            w_ref = refs[2 + 2 * layer]
            b_ref = refs[3 + 2 * layer]
            h = jnp.dot(w_ref[...], h.astype(w_ref.dtype),
                        preferred_element_type=jnp.float32) + b_ref[...]
            if layer + 1 < n_layers:
                h = jnp.maximum(h, 0.0)   # TODO(synk): hidden activation assumed ReLU

        # ----- conditional affine transform; single merged lane-dense output block -----
        beta = h[0:1, :]                   # [1, TB]
        t = jnp.tanh(h[1:2, :])            # [1, TB]
        # logabsdet = log(sum(|exp(tanh)|, -1)) over a size-1 axis == tanh exactly (y_dim == 1).
        out_ref[0:1, :] = jnp.exp(t) * y_ref[...] + beta
        out_ref[1:2, :] = t

    return kernel


def conditional_linear_transformation_forward(Y, context, params, *,
                                               block_b=65536,
                                               context_transposed=False,
                                               compute_dtype=jnp.float32):
    """Y: [B, 1] f32.  context: [B, c_dim] (or [c_dim, B] if context_transposed=True).

    params: dict with w{i} of shape [in, out] and b{i} of shape [1, out].
    Returns (Y_out [B, 1], logabsdet [B]).
    """
    n_layers = sum(1 for k in params if k.startswith("w"))
    c_dim = params["w0"].shape[0]
    dim_out = params[f"w{n_layers - 1}"].shape[1]
    assert dim_out == 2

    assert Y.ndim == 2 and Y.shape[1] == 1, "module only supports y_dim == 1"
    B = Y.shape[0]
    # [B, 1] -> [1, B] has identical linear order: typically a free bitcast, never a big copy.
    y_t = jnp.reshape(Y.astype(jnp.float32), (1, B))

    if context_transposed:
        assert context.shape == (c_dim, B)
        c_t = context.astype(jnp.float32)            # zero-copy fast path
    else:
        assert context.shape == (B, c_dim)
        c_t = context.astype(jnp.float32).T          # single fused transpose, no pad copy

    # ---- batch tile selection --------------------------------------------------
    b_ceil = _round_up(B, LANE)
    tb = min(_round_up(block_b, LANE), b_ceil)
    # v7x megacore: give both TensorCores work when the batch is big enough to split.
    if b_ceil >= 2 * LANE and pl.cdiv(B, tb) < 2:
        tb = _round_up(pl.cdiv(b_ceil, 2), LANE)
    # VMEM cap: (context + Y + merged out) blocks, double-buffered, sublane padding included.
    rows_ctx = max(_round_up(c_dim, SUBLANE), SUBLANE)
    bytes_per_col = 2 * (rows_ctx + SUBLANE + SUBLANE) * 4
    tb_cap = max(LANE, (VMEM_BUDGET_BYTES // bytes_per_col) // LANE * LANE)
    tb = min(tb, tb_cap)
    grid = (pl.cdiv(B, tb),)

    # ---- operands & specs --------------------------------------------------------
    operands = [y_t, c_t]
    in_specs = [
        pl.BlockSpec((1, tb), lambda i: (0, i)),        # Y^T tile
        pl.BlockSpec((c_dim, tb), lambda i: (0, i)),    # context^T tile
    ]
    flops = 0
    weight_bytes = 0
    for layer in range(n_layers):
        w = params[f"w{layer}"]
        b = params[f"b{layer}"]
        wt = w.astype(compute_dtype).T                       # [out, in], resident in VMEM
        bt = b.astype(jnp.float32).reshape(-1, 1)            # [out, 1]
        operands += [wt, bt]
        # Full-shape blocks with constant index_map -> DMA'd once, resident across the grid.
        in_specs += [pl.BlockSpec(wt.shape, lambda i: (0, 0)),
                     pl.BlockSpec(bt.shape, lambda i: (0, 0))]
        flops += 2 * B * w.shape[0] * w.shape[1]
        weight_bytes += wt.size * wt.dtype.itemsize + bt.size * 4

    cost = pl.CostEstimate(
        flops=int(flops),
        transcendentals=int(2 * B),                          # tanh + exp per row
        bytes_accessed=int(4 * B * (c_dim + 1 + 2) + weight_bytes))

    merged = pl.pallas_call(
        _make_clt_kernel(n_layers),
        out_shape=jax.ShapeDtypeStruct((2, B), jnp.float32),  # row 0: Y_out^T, row 1: logabsdet
        grid=grid,
        in_specs=in_specs,
        out_specs=pl.BlockSpec((2, tb), lambda i: (0, i)),
        compiler_params=pltpu.CompilerParams(
            dimension_semantics=("parallel",),
            vmem_limit_bytes=VMEM_LIMIT_BYTES),
        cost_estimate=cost,
    )(*operands)

    y_out = merged[0].reshape(B, 1)
    logabsdet = merged[1]
    return y_out, logabsdet


def _reference_forward(Y, context, params):
    """Pure-JAX reference mirroring the PyTorch module."""
    h = jnp.maximum(context @ params["w0"] + params["b0"], 0.0)
    h = jnp.maximum(h @ params["w1"] + params["b1"], 0.0)
    h = jnp.maximum(h @ params["w2"] + params["b2"], 0.0)
    out = h @ params["w3"] + params["b3"]
    beta = out[:, :1]
    alpha = jnp.exp(jnp.tanh(out[:, 1:]))
    return alpha * Y + beta, jnp.log(jnp.abs(alpha).sum(-1))


def init_params(key, c_dim, hidden_units, n_hidden_layers=3, dim_output=2):
    """Deterministic synthetic MLP parameters (stored as [in, out])."""
    dims = [c_dim] + [hidden_units] * n_hidden_layers + [dim_output]
    params = {}
    keys = jax.random.split(key, len(dims) - 1)
    for i, (din, dout) in enumerate(zip(dims[:-1], dims[1:])):
        scale = 1.0 / jnp.sqrt(din)
        params[f"w{i}"] = scale * jax.random.normal(keys[i], (din, dout), jnp.float32)
        params[f"b{i}"] = 0.01 * jnp.ones((1, dout), jnp.float32)
    return params


if __name__ == "__main__":
    key = jax.random.PRNGKey(0)
    k_y, k_c, k_p = jax.random.split(key, 3)

    batch, y_dim, c_dim, hidden_units = 8, 1, 4, 32

    Y = jax.random.normal(k_y, (batch, y_dim), jnp.float32)
    context = jax.random.normal(k_c, (batch, c_dim), jnp.float32)
    params = init_params(k_p, c_dim, hidden_units)

    # Small-shape run (single grid step, ragged lane tile handled by Pallas).
    y_out, logabsdet = conditional_linear_transformation_forward(Y, context, params)
    y_out, logabsdet = jax.block_until_ready((y_out, logabsdet))
    y_ref, lad_ref = _reference_forward(Y, context, params)
    assert y_out.shape == (batch, y_dim)
    assert logabsdet.shape == (batch,)
    assert jnp.allclose(y_out, y_ref, atol=1e-4, rtol=1e-4)
    assert jnp.allclose(logabsdet, lad_ref, atol=1e-4, rtol=1e-4)

    # Ragged batch + multi-step grid (megacore split gives 2 steps at batch=300).
    batch2 = 300
    k_y2, k_c2 = jax.random.split(jax.random.PRNGKey(1))
    Y2 = jax.random.normal(k_y2, (batch2, y_dim), jnp.float32)
    context2 = jax.random.normal(k_c2, (batch2, c_dim), jnp.float32)
    y_ref2, lad_ref2 = _reference_forward(Y2, context2, params)

    y_out2, lad2 = conditional_linear_transformation_forward(Y2, context2, params)
    y_out2, lad2 = jax.block_until_ready((y_out2, lad2))
    assert y_out2.shape == (batch2, y_dim) and lad2.shape == (batch2,)
    assert jnp.allclose(y_out2, y_ref2, atol=1e-4, rtol=1e-4)
    assert jnp.allclose(lad2, lad_ref2, atol=1e-4, rtol=1e-4)

    # Zero-copy fast path: caller supplies context pre-transposed ([c_dim, B]).
    y_out3, lad3 = conditional_linear_transformation_forward(
        Y2, context2.T, params, context_transposed=True, block_b=256)
    y_out3, lad3 = jax.block_until_ready((y_out3, lad3))
    assert jnp.allclose(y_out3, y_ref2, atol=1e-4, rtol=1e-4)
    assert jnp.allclose(lad3, lad_ref2, atol=1e-4, rtol=1e-4)

    print("KERNEL_OK")
</pallas_src>

<mosaic_0001>
module attributes {stable_mosaic.version = 11 : i64} {
  func.func @kernel(%arg0: i32, %arg1: memref<1x128xf32, #tpu.memory_space<vmem>>, %arg2: memref<4x128xf32, #tpu.memory_space<vmem>>, %arg3: memref<32x4xf32, #tpu.memory_space<vmem>>, %arg4: memref<32x1xf32, #tpu.memory_space<vmem>>, %arg5: memref<32x32xf32, #tpu.memory_space<vmem>>, %arg6: memref<32x1xf32, #tpu.memory_space<vmem>>, %arg7: memref<32x32xf32, #tpu.memory_space<vmem>>, %arg8: memref<32x1xf32, #tpu.memory_space<vmem>>, %arg9: memref<2x32xf32, #tpu.memory_space<vmem>>, %arg10: memref<2x1xf32, #tpu.memory_space<vmem>>, %arg11: memref<2x128xf32, #tpu.memory_space<vmem>>) attributes {dimension_semantics = [#tpu.dimension_semantics<parallel>], iteration_bounds = array<i64: 1>, scalar_prefetch = 0 : i64, scratch_operands = 0 : i64, tpu.core_type = #tpu.core_type<tc>, window_params = [{transform_indices = @transform_0, window_bounds = array<i64: 1, 128>}, {transform_indices = @transform_1, window_bounds = array<i64: 4, 128>}, {pipeline_mode = #tpu.pipeline_mode<synchronous>, transform_indices = @transform_2, window_bounds = array<i64: 32, 4>}, {pipeline_mode = #tpu.pipeline_mode<synchronous>, transform_indices = @transform_3, window_bounds = array<i64: 32, 1>}, {pipeline_mode = #tpu.pipeline_mode<synchronous>, transform_indices = @transform_4, window_bounds = array<i64: 32, 32>}, {pipeline_mode = #tpu.pipeline_mode<synchronous>, transform_indices = @transform_5, window_bounds = array<i64: 32, 1>}, {pipeline_mode = #tpu.pipeline_mode<synchronous>, transform_indices = @transform_6, window_bounds = array<i64: 32, 32>}, {pipeline_mode = #tpu.pipeline_mode<synchronous>, transform_indices = @transform_7, window_bounds = array<i64: 32, 1>}, {pipeline_mode = #tpu.pipeline_mode<synchronous>, transform_indices = @transform_8, window_bounds = array<i64: 2, 32>}, {pipeline_mode = #tpu.pipeline_mode<synchronous>, transform_indices = @transform_9, window_bounds = array<i64: 2, 1>}, {transform_indices = @transform_10, window_bounds = array<i64: 2, 128>}]} {
    %c0 = arith.constant 0 : index
    %c0_0 = arith.constant 0 : index
    %0 = vector.load %arg2[%c0, %c0_0] : memref<4x128xf32, #tpu.memory_space<vmem>>, vector<4x128xf32>
    %c0_1 = arith.constant 0 : index
    %c0_2 = arith.constant 0 : index
    %1 = vector.load %arg3[%c0_1, %c0_2] : memref<32x4xf32, #tpu.memory_space<vmem>>, vector<32x4xf32>
    %cst = arith.constant dense<0.000000e+00> : vector<32x128xf32>
    %2 = tpu.matmul %1, %0, %cst {dimension_numbers = #tpu.dot_dimension_numbers<[1], [0], [0], [1], [0, 0, 1, 1], [], []>} : vector<32x4xf32>, vector<4x128xf32>, vector<32x128xf32> -> vector<32x128xf32>
    %c0_3 = arith.constant 0 : index
    %c0_4 = arith.constant 0 : index
    %3 = vector.load %arg4[%c0_3, %c0_4] : memref<32x1xf32, #tpu.memory_space<vmem>>, vector<32x1xf32>
    %4 = vector.broadcast %3 : vector<32x1xf32> to vector<32x128xf32>
    %5 = arith.addf %2, %4 : vector<32x128xf32>
    %cst_5 = arith.constant 0.000000e+00 : f32
    %6 = vector.broadcast %cst_5 : f32 to vector<32x128xf32>
    %7 = arith.maximumf %5, %6 : vector<32x128xf32>
    %c0_6 = arith.constant 0 : index
    %c0_7 = arith.constant 0 : index
    %8 = vector.load %arg5[%c0_6, %c0_7] : memref<32x32xf32, #tpu.memory_space<vmem>>, vector<32x32xf32>
    %cst_8 = arith.constant dense<0.000000e+00> : vector<32x128xf32>
    %9 = tpu.matmul %8, %7, %cst_8 {dimension_numbers = #tpu.dot_dimension_numbers<[1], [0], [0], [1], [0, 0, 1, 1], [], []>} : vector<32x32xf32>, vector<32x128xf32>, vector<32x128xf32> -> vector<32x128xf32>
    %c0_9 = arith.constant 0 : index
    %c0_10 = arith.constant 0 : index
    %10 = vector.load %arg6[%c0_9, %c0_10] : memref<32x1xf32, #tpu.memory_space<vmem>>, vector<32x1xf32>
    %11 = vector.broadcast %10 : vector<32x1xf32> to vector<32x128xf32>
    %12 = arith.addf %9, %11 : vector<32x128xf32>
    %cst_11 = arith.constant 0.000000e+00 : f32
    %13 = vector.broadcast %cst_11 : f32 to vector<32x128xf32>
    %14 = arith.maximumf %12, %13 : vector<32x128xf32>
    %c0_12 = arith.constant 0 : index
    %c0_13 = arith.constant 0 : index
    %15 = vector.load %arg7[%c0_12, %c0_13] : memref<32x32xf32, #tpu.memory_space<vmem>>, vector<32x32xf32>
    %cst_14 = arith.constant dense<0.000000e+00> : vector<32x128xf32>
    %16 = tpu.matmul %15, %14, %cst_14 {dimension_numbers = #tpu.dot_dimension_numbers<[1], [0], [0], [1], [0, 0, 1, 1], [], []>} : vector<32x32xf32>, vector<32x128xf32>, vector<32x128xf32> -> vector<32x128xf32>
    %c0_15 = arith.constant 0 : index
    %c0_16 = arith.constant 0 : index
    %17 = vector.load %arg8[%c0_15, %c0_16] : memref<32x1xf32, #tpu.memory_space<vmem>>, vector<32x1xf32>
    %18 = vector.broadcast %17 : vector<32x1xf32> to vector<32x128xf32>
    %19 = arith.addf %16, %18 : vector<32x128xf32>
    %cst_17 = arith.constant 0.000000e+00 : f32
    %20 = vector.broadcast %cst_17 : f32 to vector<32x128xf32>
    %21 = arith.maximumf %19, %20 : vector<32x128xf32>
    %c0_18 = arith.constant 0 : index
    %c0_19 = arith.constant 0 : index
    %22 = vector.load %arg9[%c0_18, %c0_19] : memref<2x32xf32, #tpu.memory_space<vmem>>, vector<2x32xf32>
    %cst_20 = arith.constant dense<0.000000e+00> : vector<2x128xf32>
    %23 = tpu.matmul %22, %21, %cst_20 {dimension_numbers = #tpu.dot_dimension_numbers<[1], [0], [0], [1], [0, 0, 1, 1], [], []>} : vector<2x32xf32>, vector<32x128xf32>, vector<2x128xf32> -> vector<2x128xf32>
    %c0_21 = arith.constant 0 : index
    %c0_22 = arith.constant 0 : index
    %24 = vector.load %arg10[%c0_21, %c0_22] : memref<2x1xf32, #tpu.memory_space<vmem>>, vector<2x1xf32>
    %25 = vector.broadcast %24 : vector<2x1xf32> to vector<2x128xf32>
    %26 = arith.addf %23, %25 : vector<2x128xf32>
    %27 = vector.extract_strided_slice %26 {offsets = [0, 0], sizes = [1, 128], strides = [1, 1]} : vector<2x128xf32> to vector<1x128xf32>
    %28 = vector.extract_strided_slice %26 {offsets = [1, 0], sizes = [1, 128], strides = [1, 1]} : vector<2x128xf32> to vector<1x128xf32>
    %29 = math.tanh %28 : vector<1x128xf32>
    %30 = math.exp %29 : vector<1x128xf32>
    %c0_23 = arith.constant 0 : index
    %c0_24 = arith.constant 0 : index
    %31 = vector.load %arg1[%c0_23, %c0_24] : memref<1x128xf32, #tpu.memory_space<vmem>>, vector<1x128xf32>
    %32 = arith.mulf %30, %31 : vector<1x128xf32>
    %33 = arith.addf %32, %27 : vector<1x128xf32>
    %c0_25 = arith.constant 0 : index
    %c0_26 = arith.constant 0 : index
    %34 = vector.load %arg11[%c0_25, %c0_26] : memref<2x128xf32, #tpu.memory_space<vmem>>, vector<1x128xf32>
    tpu.vector_store %arg11[%c0_25, %c0_26], %33 {strides = array<i32>} : memref<2x128xf32, #tpu.memory_space<vmem>>, vector<1x128xf32>,
    %c1 = arith.constant 1 : index
    %c0_27 = arith.constant 0 : index
    %35 = vector.load %arg11[%c1, %c0_27] : memref<2x128xf32, #tpu.memory_space<vmem>>, vector<1x128xf32>
    tpu.vector_store %arg11[%c1, %c0_27], %29 {strides = array<i32>} : memref<2x128xf32, #tpu.memory_space<vmem>>, vector<1x128xf32>,
    return
  }
  func.func @transform_0(%arg0: i32) -> (i32, i32) {
    %c0_i32 = arith.constant 0 : i32
    %c0_i32_0 = arith.constant 0 : i32
    return %c0_i32, %arg0 : i32, i32
  }
  func.func @transform_1(%arg0: i32) -> (i32, i32) {
    %c0_i32 = arith.constant 0 : i32
    %c0_i32_0 = arith.constant 0 : i32
    return %c0_i32, %arg0 : i32, i32
  }
  func.func @transform_2(%arg0: i32) -> (i32, i32) {
    %c0_i32 = arith.constant 0 : i32
    %c0_i32_0 = arith.constant 0 : i32
    %c0_i32_1 = arith.constant 0 : i32
    return %c0_i32, %c0_i32_0 : i32, i32
  }
  func.func @transform_3(%arg0: i32) -> (i32, i32) {
    %c0_i32 = arith.constant 0 : i32
    %c0_i32_0 = arith.constant 0 : i32
    %c0_i32_1 = arith.constant 0 : i32
    return %c0_i32, %c0_i32_0 : i32, i32
  }
  func.func @transform_4(%arg0: i32) -> (i32, i32) {
    %c0_i32 = arith.constant 0 : i32
    %c0_i32_0 = arith.constant 0 : i32
    %c0_i32_1 = arith.constant 0 : i32
    return %c0_i32, %c0_i32_0 : i32, i32
  }
  func.func @transform_5(%arg0: i32) -> (i32, i32) {
    %c0_i32 = arith.constant 0 : i32
    %c0_i32_0 = arith.constant 0 : i32
    %c0_i32_1 = arith.constant 0 : i32
    return %c0_i32, %c0_i32_0 : i32, i32
  }
  func.func @transform_6(%arg0: i32) -> (i32, i32) {
    %c0_i32 = arith.constant 0 : i32
    %c0_i32_0 = arith.constant 0 : i32
    %c0_i32_1 = arith.constant 0 : i32
    return %c0_i32, %c0_i32_0 : i32, i32
  }
  func.func @transform_7(%arg0: i32) -> (i32, i32) {
    %c0_i32 = arith.constant 0 : i32
    %c0_i32_0 = arith.constant 0 : i32
    %c0_i32_1 = arith.constant 0 : i32
    return %c0_i32, %c0_i32_0 : i32, i32
  }
  func.func @transform_8(%arg0: i32) -> (i32, i32) {
    %c0_i32 = arith.constant 0 : i32
    %c0_i32_0 = arith.constant 0 : i32
    %c0_i32_1 = arith.constant 0 : i32
    return %c0_i32, %c0_i32_0 : i32, i32
  }
  func.func @transform_9(%arg0: i32) -> (i32, i32) {
    %c0_i32 = arith.constant 0 : i32
    %c0_i32_0 = arith.constant 0 : i32
    %c0_i32_1 = arith.constant 0 : i32
    return %c0_i32, %c0_i32_0 : i32, i32
  }
  func.func @transform_10(%arg0: i32) -> (i32, i32) {
    %c0_i32 = arith.constant 0 : i32
    %c0_i32_0 = arith.constant 0 : i32
    return %c0_i32, %arg0 : i32, i32
  }
}

</mosaic_0001>

<llo_original>
// kernel: tpu_custom_call.1
$region0: #{tpu_custom_call.1}
  #allocation0 [shape = 'u32[]', space=smem, size = 0x4, offset = 0x4, fixed_abs, tag = 'smem constant byte address 0x4 - core index']
  #allocation1 [shape = 'u32[144,128]{1,0:T(1,128)}', space=vmem, size = 0x12000, scoped, tag = 'internal scratch']
  %s0 = inlined_call_operand.vmem [shape: f32[1,8], index: 0, kind: input, shape index: {}]
  %s1 = inlined_call_operand.vmem [shape: f32[4,8], index: 1, kind: input, shape index: {}]
  %s2 = inlined_call_operand.vmem [shape: f32[32,4], index: 2, kind: input, shape index: {}]
  %s3 = inlined_call_operand.vmem [shape: f32[32,1], index: 3, kind: input, shape index: {}]
  %s4 = inlined_call_operand.vmem [shape: f32[32,32], index: 4, kind: input, shape index: {}]
  %s5 = inlined_call_operand.vmem [shape: f32[32,1], index: 5, kind: input, shape index: {}]
  %s6 = inlined_call_operand.vmem [shape: f32[32,32], index: 6, kind: input, shape index: {}]
  %s7 = inlined_call_operand.vmem [shape: f32[32,1], index: 7, kind: input, shape index: {}]
  %s8 = inlined_call_operand.vmem [shape: f32[2,32], index: 8, kind: input, shape index: {}]
  %s9 = inlined_call_operand.vmem [shape: f32[2,1], index: 9, kind: input, shape index: {}]
  %s10 = inlined_call_operand.hbm [shape: f32[2,8], index: 10, kind: output, shape index: {}]
  %s11 = sld [smem:[#allocation0]]
  $region50: #{tpu_custom_call.1} parent=0
    _
  %s13 = ssub.s32 1, %s11
  %s14 = scalar_select 0, %s13, %s11
  $region1: #{tpu_custom_call.1} parent=0
    #allocation2 [shape = 'u8[1024]{0}', space=vmem, size = 0x400, scoped, tag = 'output window, operand 0, single buffered']
    #allocation3 [shape = 's32[1]{0}', space=sflag, size = 0x4, scoped, tag = 'scoped memory for tpu_custom_call.1']
    %15 = vsyncpa [#allocation3], 0
    // Predicated region
    $region2: #{tpu_custom_call.1} parent=1 // pred_check
      _
    $region3: #{tpu_custom_call.1} parent=1 // pred_check_branch
      %17 = sbr.rel (0) target = $region5
    $region4: #{tpu_custom_call.1} parent=1 // pred_region
      _
    $region5: #{tpu_custom_call.1} parent=1 // pred_fallthru
      _
    // Predicated region
    $region6: #{tpu_custom_call.1} parent=1 // pred_check
      _
    $region7: #{tpu_custom_call.1} parent=1 // pred_check_branch
      %19 = sbr.rel (0) target = $region9
    $region8: #{tpu_custom_call.1} parent=1 // pred_region
      _
    $region9: #{tpu_custom_call.1} parent=1 // pred_fallthru
      _
    // Predicated region
    $region10: #{tpu_custom_call.1} parent=1 // pred_check
      _
    $region11: #{tpu_custom_call.1} parent=1 // pred_check_branch
      %21 = sbr.rel (0) target = $region13
    $region12: #{tpu_custom_call.1} parent=1 // pred_region
      _
    $region13: #{tpu_custom_call.1} parent=1 // pred_fallthru
      _
    // Predicated region
    $region14: #{tpu_custom_call.1} parent=1 // pred_check
      _
    $region15: #{tpu_custom_call.1} parent=1 // pred_check_branch
      %23 = sbr.rel (0) target = $region17
    $region16: #{tpu_custom_call.1} parent=1 // pred_region
      _
    $region17: #{tpu_custom_call.1} parent=1 // pred_fallthru
      _
    // Predicated region
    $region18: #{tpu_custom_call.1} parent=1 // pred_check
      _
    $region19: #{tpu_custom_call.1} parent=1 // pred_check_branch
      %25 = sbr.rel (0) target = $region21
    $region20: #{tpu_custom_call.1} parent=1 // pred_region
      _
    $region21: #{tpu_custom_call.1} parent=1 // pred_fallthru
      _
    // Predicated region
    $region22: #{tpu_custom_call.1} parent=1 // pred_check
      _
    $region23: #{tpu_custom_call.1} parent=1 // pred_check_branch
      %27 = sbr.rel (0) target = $region25
    $region24: #{tpu_custom_call.1} parent=1 // pred_region
      _
    $region25: #{tpu_custom_call.1} parent=1 // pred_fallthru
      _
    // Predicated region
    $region26: #{tpu_custom_call.1} parent=1 // pred_check
      _
    $region27: #{tpu_custom_call.1} parent=1 // pred_check_branch
      %29 = sbr.rel (0) target = $region29
    $region28: #{tpu_custom_call.1} parent=1 // pred_region
      _
    $region29: #{tpu_custom_call.1} parent=1 // pred_fallthru
      _
    // Predicated region
    $region30: #{tpu_custom_call.1} parent=1 // pred_check
      _
    $region31: #{tpu_custom_call.1} parent=1 // pred_check_branch
      %31 = sbr.rel (0) target = $region33
    $region32: #{tpu_custom_call.1} parent=1 // pred_region
      _
    $region33: #{tpu_custom_call.1} parent=1 // pred_fallthru
      _
    // Predicated region
    $region34: #{tpu_custom_call.1} parent=1 // pred_check
      _
    $region35: #{tpu_custom_call.1} parent=1 // pred_check_branch
      %33 = sbr.rel (0) target = $region37
    $region36: #{tpu_custom_call.1} parent=1 // pred_region
      _
    $region37: #{tpu_custom_call.1} parent=1 // pred_fallthru
      _
    // Predicated region
    $region38: #{tpu_custom_call.1} parent=1 // pred_check
      _
    $region39: #{tpu_custom_call.1} parent=1 // pred_check_branch
      %35 = sbr.rel (0) target = $region41
    $region40: #{tpu_custom_call.1} parent=1 // pred_region
      _
    $region41: #{tpu_custom_call.1} parent=1 // pred_fallthru
      _
    %v36 = vld [vmem:[%s1] sm:$0xf]
    %v37 = vld [vmem:[%s2] sm:$0xff]
    %v38 = vld [vmem:[%s2 + $0x8] sm:$0xff]
    %v39 = vld [vmem:[%s2 + $0x10] sm:$0xff]
    %v40 = vld [vmem:[%s2 + $0x18] sm:$0xff]
    %v41 = vld [vmem:[%s3] sm:$0xff]
    %v42 = vld [vmem:[%s3 + $0x8] sm:$0xff]
    %v43 = vld [vmem:[%s3 + $0x10] sm:$0xff]
    %v44 = vld [vmem:[%s3 + $0x18] sm:$0xff]
    %46 = vset.pattern.permute.xlu0 0
    %47 = vperm.xlu0 %46, %v41
    %v48 = vpop.permute.xlu0 %47
    %51 = vset.pattern.permute.xlu0 0
    %52 = vperm.xlu0 %51, %v42
    %v53 = vpop.permute.xlu0 %52
    %56 = vset.pattern.permute.xlu0 0
    %57 = vperm.xlu0 %56, %v43
    %v58 = vpop.permute.xlu0 %57
    %61 = vset.pattern.permute.xlu0 0
    %62 = vperm.xlu0 %61, %v44
    %v63 = vpop.permute.xlu0 %62
    %vm65 = vcmask 31744
    %v67 = vsel %vm65, %v37, 0
    %v70 = vsel %vm65, %v38, 0
    %v73 = vsel %vm65, %v39, 0
    %v76 = vsel %vm65, %v40, 0
    %vm78 = vcmask 1043456
    %v80 = vsel %vm78, %v36, 0
    %82 = vmatprep.subr.mxu0 0.0
    %83 = vmatpush1.msra.mxu0 0.0
    %84 = vmatprep.subr.mxu0 0.0
    %85 = vmatpush1.msra.mxu0 0.0
    %86 = vmatprep.subr.mxu0 0.0
    %87 = vmatpush1.msra.mxu0 0.0
    %88 = vmatprep.subr.mxu0 0.0
    %89 = vmatpush1.msra.mxu0 0.0
    %90 = vmatprep.subr.mxu0 0.0
    %91 = vmatpush1.msra.mxu0 0.0
    %92 = vmatprep.subr.mxu0 0.0
    %93 = vmatpush1.msra.mxu0 0.0
    %94 = vmatprep.subr.mxu0 0.0
    %95 = vmatpush1.msra.mxu0 0.0
    %96 = vmatprep.subr.mxu0 0.0
    %97 = vmatpush1.msra.mxu0 0.0
    %98 = vmatprep.subr.mxu0 0.0
    %99 = vmatpush1.msra.mxu0 0.0
    %100 = vmatprep.subr.mxu0 0.0
    %101 = vmatpush1.msra.mxu0 0.0
    %102 = vmatprep.subr.mxu0 0.0
    %103 = vmatpush1.msra.mxu0 0.0
    %104 = vmatprep.subr.mxu0 0.0
    %105 = vmatpush1.msra.mxu0 0.0
    %106 = vmatprep.subr.mxu0 0.0
    %107 = vmatpush1.msra.mxu0 0.0
    %108 = vmatprep.subr.mxu0 0.0
    %109 = vmatpush1.msra.mxu0 0.0
    %110 = vmatprep.subr.mxu0 0.0
    %111 = vmatpush1.msra.mxu0 0.0
    %112 = vmatprep.subr.mxu0 0.0
    %113 = vmatpush1.msra.mxu0 %v80
    %114 = vmatprep.subr.mxu0 0.0
    %115 = vmatpush2.msra.mxu0 0.0
    %116 = vmatprep.subr.mxu0 0.0
    %117 = vmatpush2.msra.mxu0 0.0
    %118 = vmatprep.subr.mxu0 0.0
    %119 = vmatpush2.msra.mxu0 0.0
    %120 = vmatprep.subr.mxu0 0.0
    %121 = vmatpush2.msra.mxu0 0.0
    %122 = vmatprep.subr.mxu0 0.0
    %123 = vmatpush2.msra.mxu0 0.0
    %124 = vmatprep.subr.mxu0 0.0
    %125 = vmatpush2.msra.mxu0 0.0
    %126 = vmatprep.subr.mxu0 0.0
    %127 = vmatpush2.msra.mxu0 0.0
    %128 = vmatprep.subr.mxu0 0.0
    %129 = vmatpush2.msra.mxu0 0.0
    %130 = vmatprep.subr.mxu0 0.0
    %131 = vmatpush2.msra.mxu0 0.0
    %132 = vmatprep.subr.mxu0 0.0
    %133 = vmatpush2.msra.mxu0 0.0
    %134 = vmatprep.subr.mxu0 0.0
    %135 = vmatpush2.msra.mxu0 0.0
    %136 = vmatprep.subr.mxu0 0.0
    %137 = vmatpush2.msra.mxu0 0.0
    %138 = vmatprep.subr.mxu0 0.0
    %139 = vmatpush2.msra.mxu0 0.0
    %140 = vmatprep.subr.mxu0 0.0
    %141 = vmatpush2.msra.mxu0 0.0
    %142 = vmatprep.subr.mxu0 0.0
    %143 = vmatpush2.msra.mxu0 0.0
    %144 = vmatprep.subr.mxu0 0.0
    %145 = vmatpush2.msra.mxu0 0.0
    %146 = vmatprep.mubr.f32.mxu0 0.0
    %147 = vmatmul.mubr.f32.gmra.mxu0 %v67
    %v148 = vpop.f32.mrf.mxu0
    %v149 = vadd.f32 %v48, %v148
    %v150 = vpop.f32.mrf.mxu0
    %151 = vmatprep.mubr.f32.mxu0 0.0
    %152 = vmatmul.mubr.f32.gmra.mxu0 %v70
    %v153 = vpop.f32.mrf.mxu0
    %v154 = vadd.f32 %v53, %v153
    %v155 = vpop.f32.mrf.mxu0
    %156 = vmatprep.mubr.f32.mxu0 0.0
    %157 = vmatmul.mubr.f32.gmra.mxu0 %v73
    %v158 = vpop.f32.mrf.mxu0
    %v159 = vadd.f32 %v58, %v158
    %v160 = vpop.f32.mrf.mxu0
    %161 = vmatprep.mubr.f32.mxu0 0.0
    %162 = vmatmul.mubr.f32.gmra.mxu0 %v76
    %v163 = vpop.f32.mrf.mxu0
    %v164 = vadd.f32 %v63, %v163
    %v165 = vpop.f32.mrf.mxu0
    %166 = vdwg.mxu0
    %v167 = vmax.f32 %v149, 0.0
    %v168 = vmax.f32 %v154, 0.0
    %v169 = vmax.f32 %v159, 0.0
    %v170 = vmax.f32 %v164, 0.0
    %v171 = vld [vmem:[%s4] sm:$0xff]
    %v172 = vld [vmem:[%s4 + $0x8] sm:$0xff]
    %v173 = vld [vmem:[%s4 + $0x10] sm:$0xff]
    %v174 = vld [vmem:[%s4 + $0x18] sm:$0xff]
    %v175 = vld [vmem:[%s5] sm:$0xff]
    %v176 = vld [vmem:[%s5 + $0x8] sm:$0xff]
    %v177 = vld [vmem:[%s5 + $0x10] sm:$0xff]
    %v178 = vld [vmem:[%s5 + $0x18] sm:$0xff]
    %180 = vset.pattern.permute.xlu0 0
    %181 = vperm.xlu0 %180, %v175
    %v182 = vpop.permute.xlu0 %181
    %185 = vset.pattern.permute.xlu0 0
    %186 = vperm.xlu0 %185, %v176
    %v187 = vpop.permute.xlu0 %186
    %190 = vset.pattern.permute.xlu0 0
    %191 = vperm.xlu0 %190, %v177
    %v192 = vpop.permute.xlu0 %191
    %195 = vset.pattern.permute.xlu0 0
    %196 = vperm.xlu0 %195, %v178
    %v197 = vpop.permute.xlu0 %196
    %vm199 = vcmask 261120
    %v201 = vsel %vm199, %v171, 0
    %v204 = vsel %vm199, %v172, 0
    %v207 = vsel %vm199, %v173, 0
    %v210 = vsel %vm199, %v174, 0
    %212 = vmatprep.subr.mxu0 0.0
    %213 = vmatpush1.msra.mxu0 0.0
    %214 = vmatprep.subr.mxu0 0.0
    %215 = vmatpush1.msra.mxu0 0.0
    %216 = vmatprep.subr.mxu0 0.0
    %217 = vmatpush1.msra.mxu0 0.0
    %218 = vmatprep.subr.mxu0 0.0
    %219 = vmatpush1.msra.mxu0 0.0
    %220 = vmatprep.subr.mxu0 0.0
    %221 = vmatpush1.msra.mxu0 0.0
    %222 = vmatprep.subr.mxu0 0.0
    %223 = vmatpush1.msra.mxu0 0.0
    %224 = vmatprep.subr.mxu0 0.0
    %225 = vmatpush1.msra.mxu0 0.0
    %226 = vmatprep.subr.mxu0 0.0
    %227 = vmatpush1.msra.mxu0 0.0
    %228 = vmatprep.subr.mxu0 0.0
    %229 = vmatpush1.msra.mxu0 0.0
    %230 = vmatprep.subr.mxu0 0.0
    %231 = vmatpush1.msra.mxu0 0.0
    %232 = vmatprep.subr.mxu0 0.0
    %233 = vmatpush1.msra.mxu0 0.0
    %234 = vmatprep.subr.mxu0 0.0
    %235 = vmatpush1.msra.mxu0 0.0
    %236 = vmatprep.subr.mxu0 0.0
    %237 = vmatpush1.msra.mxu0 %v170
    %238 = vmatprep.subr.mxu0 0.0
    %239 = vmatpush1.msra.mxu0 %v169
    %240 = vmatprep.subr.mxu0 0.0
    %241 = vmatpush1.msra.mxu0 %v168
    %242 = vmatprep.subr.mxu0 0.0
    %243 = vmatpush1.msra.mxu0 %v167
    %244 = vmatprep.subr.mxu0 0.0
    %245 = vmatpush2.msra.mxu0 0.0
    %246 = vmatprep.subr.mxu0 0.0
    %247 = vmatpush2.msra.mxu0 0.0
    %248 = vmatprep.subr.mxu0 0.0
    %249 = vmatpush2.msra.mxu0 0.0
    %250 = vmatprep.subr.mxu0 0.0
    %251 = vmatpush2.msra.mxu0 0.0
    %252 = vmatprep.subr.mxu0 0.0
    %253 = vmatpush2.msra.mxu0 0.0
    %254 = vmatprep.subr.mxu0 0.0
    %255 = vmatpush2.msra.mxu0 0.0
    %256 = vmatprep.subr.mxu0 0.0
    %257 = vmatpush2.msra.mxu0 0.0
    %258 = vmatprep.subr.mxu0 0.0
    %259 = vmatpush2.msra.mxu0 0.0
    %260 = vmatprep.subr.mxu0 0.0
    %261 = vmatpush2.msra.mxu0 0.0
    %262 = vmatprep.subr.mxu0 0.0
    %263 = vmatpush2.msra.mxu0 0.0
    %264 = vmatprep.subr.mxu0 0.0
    %265 = vmatpush2.msra.mxu0 0.0
    %266 = vmatprep.subr.mxu0 0.0
    %267 = vmatpush2.msra.mxu0 0.0
    %268 = vmatprep.subr.mxu0 0.0
    %269 = vmatpush2.msra.mxu0 0.0
    %270 = vmatprep.subr.mxu0 0.0
    %271 = vmatpush2.msra.mxu0 0.0
    %272 = vmatprep.subr.mxu0 0.0
    %273 = vmatpush2.msra.mxu0 0.0
    %274 = vmatprep.subr.mxu0 0.0
    %275 = vmatpush2.msra.mxu0 0.0
    %276 = vmatprep.mubr.f32.mxu0 0.0
    %277 = vmatmul.mubr.f32.gmra.mxu0 %v201
    %v278 = vpop.f32.mrf.mxu0
    %v279 = vadd.f32 %v182, %v278
    %v280 = vpop.f32.mrf.mxu0
    %281 = vmatprep.mubr.f32.mxu0 0.0
    %282 = vmatmul.mubr.f32.gmra.mxu0 %v204
    %v283 = vpop.f32.mrf.mxu0
    %v284 = vadd.f32 %v187, %v283
    %v285 = vpop.f32.mrf.mxu0
    %286 = vmatprep.mubr.f32.mxu0 0.0
    %287 = vmatmul.mubr.f32.gmra.mxu0 %v207
    %v288 = vpop.f32.mrf.mxu0
    %v289 = vadd.f32 %v192, %v288
    %v290 = vpop.f32.mrf.mxu0
    %291 = vmatprep.mubr.f32.mxu0 0.0
    %292 = vmatmul.mubr.f32.gmra.mxu0 %v210
    %v293 = vpop.f32.mrf.mxu0
    %v294 = vadd.f32 %v197, %v293
    %v295 = vpop.f32.mrf.mxu0
    %296 = vdwg.mxu0
    %v297 = vmax.f32 %v279, 0.0
    %v298 = vmax.f32 %v284, 0.0
    %v299 = vmax.f32 %v289, 0.0
    %v300 = vmax.f32 %v294, 0.0
    %v301 = vld [vmem:[%s6] sm:$0xff]
    %v302 = vld [vmem:[%s6 + $0x8] sm:$0xff]
    %v303 = vld [vmem:[%s6 + $0x10] sm:$0xff]
    %v304 = vld [vmem:[%s6 + $0x18] sm:$0xff]
    %v305 = vld [vmem:[%s7] sm:$0xff]
    %v306 = vld [vmem:[%s7 + $0x8] sm:$0xff]
    %v307 = vld [vmem:[%s7 + $0x10] sm:$0xff]
    %v308 = vld [vmem:[%s7 + $0x18] sm:$0xff]
    %310 = vset.pattern.permute.xlu0 0
    %311 = vperm.xlu0 %310, %v305
    %v312 = vpop.permute.xlu0 %311
    %315 = vset.pattern.permute.xlu0 0
    %316 = vperm.xlu0 %315, %v306
    %v317 = vpop.permute.xlu0 %316
    %320 = vset.pattern.permute.xlu0 0
    %321 = vperm.xlu0 %320, %v307
    %v322 = vpop.permute.xlu0 %321
    %325 = vset.pattern.permute.xlu0 0
    %326 = vperm.xlu0 %325, %v308
    %v327 = vpop.permute.xlu0 %326
    %v330 = vsel %vm199, %v301, 0
    %v333 = vsel %vm199, %v302, 0
    %v336 = vsel %vm199, %v303, 0
    %v339 = vsel %vm199, %v304, 0
    %341 = vmatprep.subr.mxu0 0.0
    %342 = vmatpush1.msra.mxu0 0.0
    %343 = vmatprep.subr.mxu0 0.0
    %344 = vmatpush1.msra.mxu0 0.0
    %345 = vmatprep.subr.mxu0 0.0
    %346 = vmatpush1.msra.mxu0 0.0
    %347 = vmatprep.subr.mxu0 0.0
    %348 = vmatpush1.msra.mxu0 0.0
    %349 = vmatprep.subr.mxu0 0.0
    %350 = vmatpush1.msra.mxu0 0.0
    %351 = vmatprep.subr.mxu0 0.0
    %352 = vmatpush1.msra.mxu0 0.0
    %353 = vmatprep.subr.mxu0 0.0
    %354 = vmatpush1.msra.mxu0 0.0
    %355 = vmatprep.subr.mxu0 0.0
    %356 = vmatpush1.msra.mxu0 0.0
    %357 = vmatprep.subr.mxu0 0.0
    %358 = vmatpush1.msra.mxu0 0.0
    %359 = vmatprep.subr.mxu0 0.0
    %360 = vmatpush1.msra.mxu0 0.0
    %361 = vmatprep.subr.mxu0 0.0
    %362 = vmatpush1.msra.mxu0 0.0
    %363 = vmatprep.subr.mxu0 0.0
    %364 = vmatpush1.msra.mxu0 0.0
    %365 = vmatprep.subr.mxu0 0.0
    %366 = vmatpush1.msra.mxu0 %v300
    %367 = vmatprep.subr.mxu0 0.0
    %368 = vmatpush1.msra.mxu0 %v299
    %369 = vmatprep.subr.mxu0 0.0
    %370 = vmatpush1.msra.mxu0 %v298
    %371 = vmatprep.subr.mxu0 0.0
    %372 = vmatpush1.msra.mxu0 %v297
    %373 = vmatprep.subr.mxu0 0.0
    %374 = vmatpush2.msra.mxu0 0.0
    %375 = vmatprep.subr.mxu0 0.0
    %376 = vmatpush2.msra.mxu0 0.0
    %377 = vmatprep.subr.mxu0 0.0
    %378 = vmatpush2.msra.mxu0 0.0
    %379 = vmatprep.subr.mxu0 0.0
    %380 = vmatpush2.msra.mxu0 0.0
    %381 = vmatprep.subr.mxu0 0.0
    %382 = vmatpush2.msra.mxu0 0.0
    %383 = vmatprep.subr.mxu0 0.0
    %384 = vmatpush2.msra.mxu0 0.0
    %385 = vmatprep.subr.mxu0 0.0
    %386 = vmatpush2.msra.mxu0 0.0
    %387 = vmatprep.subr.mxu0 0.0
    %388 = vmatpush2.msra.mxu0 0.0
    %389 = vmatprep.subr.mxu0 0.0
    %390 = vmatpush2.msra.mxu0 0.0
    %391 = vmatprep.subr.mxu0 0.0
    %392 = vmatpush2.msra.mxu0 0.0
    %393 = vmatprep.subr.mxu0 0.0
    %394 = vmatpush2.msra.mxu0 0.0
    %395 = vmatprep.subr.mxu0 0.0
    %396 = vmatpush2.msra.mxu0 0.0
    %397 = vmatprep.subr.mxu0 0.0
    %398 = vmatpush2.msra.mxu0 0.0
    %399 = vmatprep.subr.mxu0 0.0
    %400 = vmatpush2.msra.mxu0 0.0
    %401 = vmatprep.subr.mxu0 0.0
    %402 = vmatpush2.msra.mxu0 0.0
    %403 = vmatprep.subr.mxu0 0.0
    %404 = vmatpush2.msra.mxu0 0.0
    %405 = vmatprep.mubr.f32.mxu0 0.0
    %406 = vmatmul.mubr.f32.gmra.mxu0 %v330
    %v407 = vpop.f32.mrf.mxu0
    %v408 = vadd.f32 %v312, %v407
    %v409 = vpop.f32.mrf.mxu0
    %410 = vmatprep.mubr.f32.mxu0 0.0
    %411 = vmatmul.mubr.f32.gmra.mxu0 %v333
    %v412 = vpop.f32.mrf.mxu0
    %v413 = vadd.f32 %v317, %v412
    %v414 = vpop.f32.mrf.mxu0
    %415 = vmatprep.mubr.f32.mxu0 0.0
    %416 = vmatmul.mubr.f32.gmra.mxu0 %v336
    %v417 = vpop.f32.mrf.mxu0
    %v418 = vadd.f32 %v322, %v417
    %v419 = vpop.f32.mrf.mxu0
    %420 = vmatprep.mubr.f32.mxu0 0.0
    %421 = vmatmul.mubr.f32.gmra.mxu0 %v339
    %v422 = vpop.f32.mrf.mxu0
    %v423 = vadd.f32 %v327, %v422
    %v424 = vpop.f32.mrf.mxu0
    %425 = vdwg.mxu0
    %v426 = vmax.f32 %v408, 0.0
    %v427 = vmax.f32 %v413, 0.0
    %v428 = vmax.f32 %v418, 0.0
    %v429 = vmax.f32 %v423, 0.0
    %v430 = vld [vmem:[%s8] sm:$0x3]
    %v431 = vld [vmem:[%s9] sm:$0x3]
    %433 = vset.pattern.permute.xlu0 0
    %434 = vperm.xlu0 %433, %v431
    %v435 = vpop.permute.xlu0 %434
    %v438 = vsel %vm199, %v430, 0
    %440 = vmatprep.subr.mxu0 0.0
    %441 = vmatpush1.msra.mxu0 0.0
    %442 = vmatprep.subr.mxu0 0.0
    %443 = vmatpush1.msra.mxu0 0.0
    %444 = vmatprep.subr.mxu0 0.0
    %445 = vmatpush1.msra.mxu0 0.0
    %446 = vmatprep.subr.mxu0 0.0
    %447 = vmatpush1.msra.mxu0 0.0
    %448 = vmatprep.subr.mxu0 0.0
    %449 = vmatpush1.msra.mxu0 0.0
    %450 = vmatprep.subr.mxu0 0.0
    %451 = vmatpush1.msra.mxu0 0.0
    %452 = vmatprep.subr.mxu0 0.0
    %453 = vmatpush1.msra.mxu0 0.0
    %454 = vmatprep.subr.mxu0 0.0
    %455 = vmatpush1.msra.mxu0 0.0
    %456 = vmatprep.subr.mxu0 0.0
    %457 = vmatpush1.msra.mxu0 0.0
    %458 = vmatprep.subr.mxu0 0.0
    %459 = vmatpush1.msra.mxu0 0.0
    %460 = vmatprep.subr.mxu0 0.0
    %461 = vmatpush1.msra.mxu0 0.0
    %462 = vmatprep.subr.mxu0 0.0
    %463 = vmatpush1.msra.mxu0 0.0
    %464 = vmatprep.subr.mxu0 0.0
    %465 = vmatpush1.msra.mxu0 %v429
    %466 = vmatprep.subr.mxu0 0.0
    %467 = vmatpush1.msra.mxu0 %v428
    %468 = vmatprep.subr.mxu0 0.0
    %469 = vmatpush1.msra.mxu0 %v427
    %470 = vmatprep.subr.mxu0 0.0
    %471 = vmatpush1.msra.mxu0 %v426
    %472 = vmatprep.subr.mxu0 0.0
    %473 = vmatpush2.msra.mxu0 0.0
    %474 = vmatprep.subr.mxu0 0.0
    %475 = vmatpush2.msra.mxu0 0.0
    %476 = vmatprep.subr.mxu0 0.0
    %477 = vmatpush2.msra.mxu0 0.0
    %478 = vmatprep.subr.mxu0 0.0
    %479 = vmatpush2.msra.mxu0 0.0
    %480 = vmatprep.subr.mxu0 0.0
    %481 = vmatpush2.msra.mxu0 0.0
    %482 = vmatprep.subr.mxu0 0.0
    %483 = vmatpush2.msra.mxu0 0.0
    %484 = vmatprep.subr.mxu0 0.0
    %485 = vmatpush2.msra.mxu0 0.0
    %486 = vmatprep.subr.mxu0 0.0
    %487 = vmatpush2.msra.mxu0 0.0
    %488 = vmatprep.subr.mxu0 0.0
    %489 = vmatpush2.msra.mxu0 0.0
    %490 = vmatprep.subr.mxu0 0.0
    %491 = vmatpush2.msra.mxu0 0.0
    %492 = vmatprep.subr.mxu0 0.0
    %493 = vmatpush2.msra.mxu0 0.0
    %494 = vmatprep.subr.mxu0 0.0
    %495 = vmatpush2.msra.mxu0 0.0
    %496 = vmatprep.subr.mxu0 0.0
    %497 = vmatpush2.msra.mxu0 0.0
    %498 = vmatprep.subr.mxu0 0.0
    %499 = vmatpush2.msra.mxu0 0.0
    %500 = vmatprep.subr.mxu0 0.0
    %501 = vmatpush2.msra.mxu0 0.0
    %502 = vmatprep.subr.mxu0 0.0
    %503 = vmatpush2.msra.mxu0 0.0
    %504 = vmatprep.mubr.f32.mxu0 0.0
    %505 = vmatmul.mubr.f32.gmra.mxu0 %v438
    %v506 = vpop.f32.mrf.mxu0
    %v507 = vadd.f32 %v435, %v506
    %v508 = vpop.f32.mrf.mxu0
    %509 = vdwg.mxu0
    %v510 = vtanh.pop %v507
    %v511 = vmul.f32 %v510, 1.442695
    %v512 = vpow.pop %v511
    %v513 = vld [vmem:[%s0] sm:$0x1]
    %v515 = vlaneseq
    %v516 = vshrl.u32 %v515, 7
    %v517 = vsub.s32 0, %v516
    %v518 = vrot.slane %v513, %v517
    %v520 = vmul.f32 %v512, %v518
    %v522 = vrot.slane %v507, 7
    %v524 = vadd.f32 %v520, %v522
    %525 = vst [vmem:[#allocation2 - $0x1] sm:$0x2] %v524
    %526 = vst [vmem:[#allocation2] sm:$0x2] %v510
    // Predicated region
    $region42: #{tpu_custom_call.1} parent=1 // pred_check
      _
    $region43: #{tpu_custom_call.1} parent=1 // pred_check_branch
      %528 = sbr.rel (0) target = $region45
    $region44: #{tpu_custom_call.1} parent=1 // pred_region
      %s530 = ssub.s32 32, 32
      %531 = vsyncadd [#allocation3], %s530
      %s533 = sshll.u32 [#allocation2], 4
      %s534 = int_to_ptr.vmem [resolvable:$true] %s533
      %536 = dma.vmem_to_hbm [thread:$0]  %s534, 32, %s10, [#allocation3]
    $region45: #{tpu_custom_call.1} parent=1 // pred_fallthru
      _
    // Predicated region
    $region46: #{tpu_custom_call.1} parent=1 // pred_check
      _
    $region47: #{tpu_custom_call.1} parent=1 // pred_check_branch
      %538 = sbr.rel (0) target = $region49
    $region48: #{tpu_custom_call.1} parent=1 // pred_region
      %539 = dma.done [#allocation3], 32
    $region49: #{tpu_custom_call.1} parent=1 // pred_fallthru
      _
    %540 = vsyncpa [#allocation3], 1

</llo_original>
